<compile_context>
chip_gen: v6e
topology: v6e:2x2x1
jax: 0.10.0
libtpu: 0.0.40
codegen_flags: <defaults>
</compile_context>

<pallas_src>
import functools

import jax
import jax.numpy as jnp
from jax.experimental import pallas as pl
from jax.experimental.pallas import tpu as pltpu


def _round_up(x, m):
    return -(-x // m) * m


def _fourier_kernel(posT_ref, bT_ref, out_ref, *, pos_dim, enc_dim):
    # posT_ref: (pos_dim, TM)     — original rows live on the 128-wide lane axis
    # bT_ref:   (enc_dim, pos_dim) — tiny, resident across the whole grid
    # out_ref:  (2*enc_dim, TM)    — transposed output, fully lane-dense stores
    pT = posT_ref[...]
    bT = bT_ref[...]
    # Tiny-K contraction on the VPU (a (TM,4)x(4,16) MXU matmul would light up
    # <1% of the array and pay MRF/MRB latency): 4 broadcast FMAs.  encT is
    # lane-dense so the dominant sin/cos polynomials below run on full vregs.
    enc = bT[:, 0:1] * pT[0:1, :]
    for k in range(1, pos_dim):
        enc = enc + bT[:, k:k + 1] * pT[k:k + 1, :]
    out_ref[:enc_dim, :] = jnp.sin(enc)
    out_ref[enc_dim:, :] = jnp.cos(enc)


def fourier_features(pos, B, *, tile_rows=8192):
    """pos: [..., pos_dim] (any float/int dtype), B: [pos_dim, enc_dim].

    Returns [..., 2*enc_dim] float32, matching
        torch.cat([sin(pos.float() @ B), cos(pos.float() @ B)], dim=-1).
    """
    pos = pos.astype(jnp.float32)          # matches pos.float() in torch
    B = B.astype(jnp.float32)
    *lead, pos_dim = pos.shape
    enc_dim = B.shape[1]
    ch = 2 * enc_dim

    n = 1
    for d in lead:
        n *= d

    # Lane-major ("transposed") views: rows of `pos` live on the lane axis so
    # sin/cos run lane-dense inside the kernel.  The pos transpose touches only
    # 16 B/row; the B transpose is negligible.
    posT = pos.reshape(n, pos_dim).T          # (pos_dim, n)
    bT = B.T                                  # (enc_dim, pos_dim)

    # Tile the row/lane axis.  Lane extent of a block must be a multiple of 128
    # or the full axis, so tiny inputs get one full block; larger inputs get
    # >=2 grid steps (v7x can then shard the "parallel" axis over both TCs),
    # capped at tile_rows per step.  Ragged final blocks are masked by Pallas
    # — no wrapper-side pad of pos and no post-slice of the output.
    tile_rows = max(128, _round_up(tile_rows, 128))
    if n <= 128:
        tm = n
    else:
        tm = min(tile_rows, _round_up(pl.cdiv(n, 2), 128))
    grid = (pl.cdiv(n, tm),)

    kernel = functools.partial(_fourier_kernel, pos_dim=pos_dim, enc_dim=enc_dim)

    cost = pl.CostEstimate(
        flops=2 * n * pos_dim * enc_dim,
        transcendentals=2 * n * enc_dim,
        bytes_accessed=(n * (pos_dim + ch) + pos_dim * enc_dim) * 4,
    )

    outT = pl.pallas_call(
        kernel,
        out_shape=jax.ShapeDtypeStruct((ch, n), jnp.float32),
        grid_spec=pltpu.PrefetchScalarGridSpec(
            num_scalar_prefetch=0,
            grid=grid,
            in_specs=[
                # pos^T tile marches along the lane (row) axis.
                pl.BlockSpec((pos_dim, tm), lambda i: (0, i)),
                # B^T is tiny and stays resident (same block every step).
                pl.BlockSpec((enc_dim, pos_dim), lambda i: (0, 0)),
            ],
            out_specs=pl.BlockSpec((ch, tm), lambda i: (0, i)),
        ),
        compiler_params=pltpu.CompilerParams(
            # Independent over rows: lets v7x shard the grid across its two
            # TensorCores; measured-neutral on single-core v5e/v6e.
            dimension_semantics=("parallel",),
        ),
        cost_estimate=cost,
    )(posT, bT)

    # One XLA transpose back to channel-minor layout for exact torch parity
    # (kernel-side stores stay fully lane-dense).
    return outT.T.reshape(*lead, ch)


if __name__ == "__main__":
    # Module config: pos_dim=4, ch=32 (enc_dim=16), sigma=10.
    pos_dim, ch, sigma = 4, 32, 10.0
    enc_dim = ch // 2

    key = jax.random.PRNGKey(0)
    k_b, k_pos = jax.random.split(key)

    # Deterministic stand-in for torch.randn([pos_dim, enc_dim]) * sigma.
    B = jax.random.normal(k_b, (pos_dim, enc_dim), dtype=jnp.float32) * sigma
    # Example positions: batch=2, seq=8, pos_dim=4.
    pos = jax.random.normal(k_pos, (2, 8, pos_dim), dtype=jnp.float32)

    out = jax.block_until_ready(fourier_features(pos, B))
    assert out.shape == (2, 8, ch), out.shape
    assert out.dtype == jnp.float32

    def reference(p, b):
        enc = jnp.dot(p.astype(jnp.float32), b,
                      precision=jax.lax.Precision.HIGHEST)
        return jnp.concatenate([jnp.sin(enc), jnp.cos(enc)], axis=-1)

    # sigma=10 pushes |pos @ B| to ~60-90, so a few ulps of argument error
    # (accumulation order, f32 range reduction) show up as ~1e-5..1e-4 in the
    # sin/cos values; the tolerance reflects that, not a kernel defect.
    ref = reference(pos, B)
    assert jnp.allclose(out, ref, atol=1e-3, rtol=1e-5), \
        float(jnp.max(jnp.abs(out - ref)))
    s, c = out[..., :enc_dim], out[..., enc_dim:]
    assert jnp.allclose(s * s + c * c, 1.0, atol=1e-5)

    # Multi-tile + ragged remainder path (grid > 1, n % TM != 0, no padding).
    pos_big = jax.random.normal(jax.random.PRNGKey(1), (3, 701, pos_dim),
                                dtype=jnp.float32)
    out_big = jax.block_until_ready(fourier_features(pos_big, B, tile_rows=512))
    ref_big = reference(pos_big, B)
    assert out_big.shape == (3, 701, ch)
    assert jnp.allclose(out_big, ref_big, atol=1e-3, rtol=1e-5), \
        float(jnp.max(jnp.abs(out_big - ref_big)))

    # Small-magnitude arguments: tight tolerance confirms the kernel math is
    # exact up to ordinary f32 rounding.
    B_small = B * 0.01
    out_small = jax.block_until_ready(fourier_features(pos_big, B_small))
    ref_small = reference(pos_big, B_small)
    assert jnp.allclose(out_small, ref_small, atol=1e-5, rtol=1e-5), \
        float(jnp.max(jnp.abs(out_small - ref_small)))

    print("KERNEL_OK")
</pallas_src>

<mosaic_0001>
module attributes {stable_mosaic.version = 11 : i64} {
  func.func @_fourier_kernel(%arg0: i32, %arg1: memref<4x16xf32, #tpu.memory_space<vmem>>, %arg2: memref<16x4xf32, #tpu.memory_space<vmem>>, %arg3: memref<32x16xf32, #tpu.memory_space<vmem>>) attributes {dimension_semantics = [#tpu.dimension_semantics<parallel>], iteration_bounds = array<i64: 1>, scalar_prefetch = 0 : i64, scratch_operands = 0 : i64, tpu.core_type = #tpu.core_type<tc>, window_params = [{transform_indices = @transform_0, window_bounds = array<i64: 4, 16>}, {pipeline_mode = #tpu.pipeline_mode<synchronous>, transform_indices = @transform_1, window_bounds = array<i64: 16, 4>}, {transform_indices = @transform_2, window_bounds = array<i64: 32, 16>}]} {
    %c0 = arith.constant 0 : index
    %c0_0 = arith.constant 0 : index
    %0 = vector.load %arg1[%c0, %c0_0] : memref<4x16xf32, #tpu.memory_space<vmem>>, vector<4x16xf32>
    %c0_1 = arith.constant 0 : index
    %c0_2 = arith.constant 0 : index
    %1 = vector.load %arg2[%c0_1, %c0_2] : memref<16x4xf32, #tpu.memory_space<vmem>>, vector<16x4xf32>
    %2 = vector.extract_strided_slice %1 {offsets = [0, 0], sizes = [16, 1], strides = [1, 1]} : vector<16x4xf32> to vector<16x1xf32>
    %3 = vector.extract_strided_slice %0 {offsets = [0, 0], sizes = [1, 16], strides = [1, 1]} : vector<4x16xf32> to vector<1x16xf32>
    %4 = vector.broadcast %2 : vector<16x1xf32> to vector<16x16xf32>
    %5 = vector.broadcast %3 : vector<1x16xf32> to vector<16x16xf32>
    %6 = arith.mulf %4, %5 : vector<16x16xf32>
    %7 = vector.extract_strided_slice %1 {offsets = [0, 1], sizes = [16, 1], strides = [1, 1]} : vector<16x4xf32> to vector<16x1xf32>
    %8 = vector.extract_strided_slice %0 {offsets = [1, 0], sizes = [1, 16], strides = [1, 1]} : vector<4x16xf32> to vector<1x16xf32>
    %9 = vector.broadcast %7 : vector<16x1xf32> to vector<16x16xf32>
    %10 = vector.broadcast %8 : vector<1x16xf32> to vector<16x16xf32>
    %11 = arith.mulf %9, %10 : vector<16x16xf32>
    %12 = arith.addf %6, %11 : vector<16x16xf32>
    %13 = vector.extract_strided_slice %1 {offsets = [0, 2], sizes = [16, 1], strides = [1, 1]} : vector<16x4xf32> to vector<16x1xf32>
    %14 = vector.extract_strided_slice %0 {offsets = [2, 0], sizes = [1, 16], strides = [1, 1]} : vector<4x16xf32> to vector<1x16xf32>
    %15 = vector.broadcast %13 : vector<16x1xf32> to vector<16x16xf32>
    %16 = vector.broadcast %14 : vector<1x16xf32> to vector<16x16xf32>
    %17 = arith.mulf %15, %16 : vector<16x16xf32>
    %18 = arith.addf %12, %17 : vector<16x16xf32>
    %19 = vector.extract_strided_slice %1 {offsets = [0, 3], sizes = [16, 1], strides = [1, 1]} : vector<16x4xf32> to vector<16x1xf32>
    %20 = vector.extract_strided_slice %0 {offsets = [3, 0], sizes = [1, 16], strides = [1, 1]} : vector<4x16xf32> to vector<1x16xf32>
    %21 = vector.broadcast %19 : vector<16x1xf32> to vector<16x16xf32>
    %22 = vector.broadcast %20 : vector<1x16xf32> to vector<16x16xf32>
    %23 = arith.mulf %21, %22 : vector<16x16xf32>
    %24 = arith.addf %18, %23 : vector<16x16xf32>
    %25 = math.sin %24 : vector<16x16xf32>
    %c0_3 = arith.constant 0 : index
    %c0_4 = arith.constant 0 : index
    %26 = vector.load %arg3[%c0_3, %c0_4] : memref<32x16xf32, #tpu.memory_space<vmem>>, vector<16x16xf32>
    tpu.vector_store %arg3[%c0_3, %c0_4], %25 {strides = array<i32>} : memref<32x16xf32, #tpu.memory_space<vmem>>, vector<16x16xf32>,
    %27 = math.cos %24 : vector<16x16xf32>
    %c16 = arith.constant 16 : index
    %c0_5 = arith.constant 0 : index
    %28 = vector.load %arg3[%c16, %c0_5] : memref<32x16xf32, #tpu.memory_space<vmem>>, vector<16x16xf32>
    tpu.vector_store %arg3[%c16, %c0_5], %27 {strides = array<i32>} : memref<32x16xf32, #tpu.memory_space<vmem>>, vector<16x16xf32>,
    return
  }
  func.func @transform_0(%arg0: i32) -> (i32, i32) {
    %c0_i32 = arith.constant 0 : i32
    %c0_i32_0 = arith.constant 0 : i32
    return %c0_i32, %arg0 : i32, i32
  }
  func.func @transform_1(%arg0: i32) -> (i32, i32) {
    %c0_i32 = arith.constant 0 : i32
    %c0_i32_0 = arith.constant 0 : i32
    %c0_i32_1 = arith.constant 0 : i32
    return %c0_i32, %c0_i32_0 : i32, i32
  }
  func.func @transform_2(%arg0: i32) -> (i32, i32) {
    %c0_i32 = arith.constant 0 : i32
    %c0_i32_0 = arith.constant 0 : i32
    return %c0_i32, %arg0 : i32, i32
  }
}

</mosaic_0001>

<llo_original>
// kernel: tpu_custom_call.1
$region0: #{tpu_custom_call.1}
  #allocation0 [shape = 'u32[]', space=smem, size = 0x4, offset = 0x4, fixed_abs, tag = 'smem constant byte address 0x4 - core index']
  #allocation1 [shape = 'u32[144,128]{1,0:T(1,128)}', space=vmem, size = 0x12000, scoped, tag = 'internal scratch']
  %s0 = inlined_call_operand.vmem [shape: f32[4,16], index: 0, kind: input, shape index: {}]
  %s1 = inlined_call_operand.vmem [shape: f32[16,4], index: 1, kind: input, shape index: {}]
  %s2 = inlined_call_operand.vmem [shape: f32[32,16], index: 2, kind: output, shape index: {}]
  %s3 = sld [smem:[#allocation0]]
  $region18: #{tpu_custom_call.1} parent=0
    _
  %s5 = ssub.s32 1, %s3
  %s6 = scalar_select 0, %s5, %s3
  // Predicated region
  $region2: #{tpu_custom_call.1} parent=0 // pred_check
    _
  $region3: #{tpu_custom_call.1} parent=0 // pred_check_branch
    %8 = sbr.rel (0) target = $region5
  $region4: #{tpu_custom_call.1} parent=0 // pred_region
    _
  $region5: #{tpu_custom_call.1} parent=0 // pred_fallthru
    _
  // Predicated region
  $region6: #{tpu_custom_call.1} parent=0 // pred_check
    _
  $region7: #{tpu_custom_call.1} parent=0 // pred_check_branch
    %10 = sbr.rel (0) target = $region9
  $region8: #{tpu_custom_call.1} parent=0 // pred_region
    _
  $region9: #{tpu_custom_call.1} parent=0 // pred_fallthru
    _
  %v11 = vld [vmem:[%s0] sm:$0xf]
  %v12 = vld [vmem:[%s1] sm:$0xff]
  %v13 = vld [vmem:[%s1 + $0x8] sm:$0xff]
  %15 = vset.pattern.permute.xlu0 0
  %16 = vperm.xlu0 %15, %v12
  %v17 = vpop.permute.xlu0 %16
  %20 = vset.pattern.permute.xlu0 0
  %21 = vperm.xlu0 %20, %v13
  %v22 = vpop.permute.xlu0 %21
  %v24 = vlaneseq
  %v25 = vshrl.u32 %v24, 7
  %v26 = vsub.s32 0, %v25
  %v27 = vrot.slane %v11, %v26
  %v28 = vmul.f32 %v17, %v27
  %v29 = vmul.f32 %v22, %v27
  %30 = vset.pattern.permute.xlu0 1
  %31 = vperm.xlu0 %30, %v12
  %v32 = vpop.permute.xlu0 %31
  %34 = vset.pattern.permute.xlu0 1
  %35 = vperm.xlu0 %34, %v13
  %v36 = vpop.permute.xlu0 %35
  %v38 = vlaneseq
  %v39 = vshrl.u32 %v38, 7
  %v40 = vsub.s32 1, %v39
  %v41 = vrot.slane %v11, %v40
  %v42 = vmul.f32 %v32, %v41
  %v43 = vmul.f32 %v36, %v41
  %v44 = vadd.f32 %v28, %v42
  %v45 = vadd.f32 %v29, %v43
  %46 = vset.pattern.permute.xlu0 2
  %47 = vperm.xlu0 %46, %v12
  %v48 = vpop.permute.xlu0 %47
  %50 = vset.pattern.permute.xlu0 2
  %51 = vperm.xlu0 %50, %v13
  %v52 = vpop.permute.xlu0 %51
  %v54 = vlaneseq
  %v55 = vshrl.u32 %v54, 7
  %v56 = vsub.s32 2, %v55
  %v57 = vrot.slane %v11, %v56
  %v58 = vmul.f32 %v48, %v57
  %v59 = vmul.f32 %v52, %v57
  %v60 = vadd.f32 %v44, %v58
  %v61 = vadd.f32 %v45, %v59
  %62 = vset.pattern.permute.xlu0 3
  %63 = vperm.xlu0 %62, %v12
  %v64 = vpop.permute.xlu0 %63
  %66 = vset.pattern.permute.xlu0 3
  %67 = vperm.xlu0 %66, %v13
  %v68 = vpop.permute.xlu0 %67
  %v70 = vlaneseq
  %v71 = vshrl.u32 %v70, 7
  %v72 = vsub.s32 3, %v71
  %v73 = vrot.slane %v11, %v72
  %v74 = vmul.f32 %v64, %v73
  %v75 = vmul.f32 %v68, %v73
  %v76 = vadd.f32 %v60, %v74
  %v77 = vadd.f32 %v61, %v75
  %v78 = vand.u32 2147483647, %v76
  %vm79 = vcmp.le.f32.partialorder %v78, 0.7853982
  %vm80 = vcmp.lt.s32.totalorder %v76, 0
  %v81 = vand.u32 %v76, 2139095040
  %v82 = vshrl.u32 %v81, 23
  %v83 = vsub.s32 %v82, 127
  %v84 = vand.u32 2147483647, %v76
  %v85 = vand.u32 %v84, 8388607
  %v86 = vor.u32 %v85, 8388608
  %v87 = vsub.s32 0, %v86
  %v88 = vadd.s32 %v83, 1
  %vm89 = vcmp.gt.s32.totalorder %v88, 0
  %v90 = vsel %vm89, %v88, 0
  %v91 = vshrl.u32 %v90, 5
  %v92 = vand.u32 %v90, 31
  %v93 = vsub.s32 32, %v92
  %v94 = vshrl.u32 683565275, %v93
  %v95 = vshll.u32 683565275, %v92
  %v96 = vshrl.u32 2475754826, %v93
  %v97 = vor.u32 %v95, %v96
  %v98 = vshll.u32 2475754826, %v92
  %v99 = vshrl.u32 2131351028, %v93
  %v100 = vor.u32 %v98, %v99
  %v101 = vshll.u32 2131351028, %v92
  %v102 = vshrl.u32 2102212464, %v93
  %v103 = vor.u32 %v101, %v102
  %v104 = vshll.u32 2102212464, %v92
  %v105 = vshrl.u32 920167782, %v93
  %v106 = vor.u32 %v104, %v105
  %v107 = vshll.u32 920167782, %v92
  %v108 = vshrl.u32 1326507024, %v93
  %v109 = vor.u32 %v107, %v108
  %vm110 = vcmp.lt.s32.totalorder %v91, 1
  %vm111 = vcmp.lt.s32.totalorder %v91, 2
  %vm112 = vcmp.lt.s32.totalorder %v91, 3
  %vm113 = vcmp.lt.s32.totalorder %v91, 4
  %v114 = vsel %vm110, %v94, %v97
  %v115 = vsel %vm113, %v103, 2102212464
  %v116 = vsel %vm112, %v100, %v115
  %v117 = vsel %vm111, %v114, %v116
  %v118 = vsel %vm110, %v97, %v100
  %v119 = vsel %vm113, %v106, 920167782
  %v120 = vsel %vm112, %v103, %v119
  %v121 = vsel %vm111, %v118, %v120
  %v122 = vsel %vm110, %v100, %v103
  %v123 = vsel %vm113, %v109, 1326507024
  %v124 = vsel %vm112, %v106, %v123
  %v125 = vsel %vm111, %v122, %v124
  %v126 = vshll.u32 %v86, 8
  %v127 = vmul.u32.u64.compose %v126, %v125
  %v128 = vextract.low.u32 %v127
  %v129 = vextract.high.u32 %v127
  %v130 = vmul.u32.u64.compose %v126, %v121
  %v131 = vextract.low.u32 %v130
  %v132 = vextract.high.u32 %v130
  %v133 = vmul.u32 %v126, %v117
  %v134 = vadd.s32 %v129, %v131
  %vm135 = vc.u32 %v129, %v131
  %v136 = vadd.s32 %v132, 1
  %v137 = vsel %vm135, %v136, %v132
  %v138 = vadd.s32 %v133, %v137
  %v139 = vadd.s32 %v138, 536870912
  %v140 = vshrl.u32 %v139, 30
  %v141 = vshll.u32 %v140, 30
  %v142 = vsub.s32 %v138, %v141
  %vm143 = vcmp.lt.s32.totalorder %v142, 0
  %v144 = vsub.s32 0, %v142
  %v145 = vsel %vm143, %v144, %v142
  %v146 = vclz %v145
  %v147 = vsub.s32 %v146, 2
  %vm148 = vcmp.gt.s32.totalorder 0, %v147
  %v149 = vsel %vm148, 0, %v147
  %v150 = vsub.s32 32, %v149
  %v151 = vshll.u32 %v142, %v149
  %v152 = vshrl.u32 %v134, %v150
  %v153 = vor.u32 %v151, %v152
  %v154 = vsub.s32 4294967266, %v149
  %v155 = vadd.s32 %v154, 127
  %v156 = vshll.u32 %v155, 23
  %v157 = vor.u32 4788187, %v156
  %v158 = vand.u32 2147483647, %v157
  %v160 = vcvt.s32.f32 %v153
  %v161 = vmul.f32 %v160, %v158
  %v162 = vxor.u32 %v161, 2147483648
  %v163 = vsel %vm80, %v162, %v161
  %v164 = vsub.s32 4, %v140
  %v165 = vsel %vm80, %v164, %v140
  %v166 = vsel %vm79, %v76, %v163
  %v167 = vsel %vm79, 0, %v165
  %v168 = vcosq.f32.pop %v166
  %v169 = vsinq.f32.pop %v166
  %vm170 = vweird.f32 %v76
  %v171 = vadd.s32 %v167, 3
  %v172 = vand.u32 %v171, 3
  %vm173 = vcmp.lt.s32.totalorder %v172, 2
  %vm174 = vcmp.eq.s32.totalorder %v172, 0
  %v175 = vxor.u32 %v169, 2147483648
  %v176 = vsel %vm174, %v168, %v175
  %vm177 = vcmp.eq.s32.totalorder %v172, 2
  %v178 = vxor.u32 %v168, 2147483648
  %v179 = vsel %vm177, %v178, %v169
  %v180 = vsel %vm173, %v176, %v179
  %v181 = vsel %vm170, nan, %v180
  %v182 = vand.u32 2147483647, %v77
  %vm183 = vcmp.le.f32.partialorder %v182, 0.7853982
  %vm184 = vcmp.lt.s32.totalorder %v77, 0
  %v185 = vand.u32 %v77, 2139095040
  %v186 = vshrl.u32 %v185, 23
  %v187 = vsub.s32 %v186, 127
  %v188 = vand.u32 2147483647, %v77
  %v189 = vand.u32 %v188, 8388607
  %v190 = vor.u32 %v189, 8388608
  %v191 = vsub.s32 0, %v190
  %v192 = vadd.s32 %v187, 1
  %vm193 = vcmp.gt.s32.totalorder %v192, 0
  %v194 = vsel %vm193, %v192, 0
  %v195 = vshrl.u32 %v194, 5
  %v196 = vand.u32 %v194, 31
  %v197 = vsub.s32 32, %v196
  %v198 = vshrl.u32 683565275, %v197
  %v199 = vshll.u32 683565275, %v196
  %v200 = vshrl.u32 2475754826, %v197
  %v201 = vor.u32 %v199, %v200
  %v202 = vshll.u32 2475754826, %v196
  %v203 = vshrl.u32 2131351028, %v197
  %v204 = vor.u32 %v202, %v203
  %v205 = vshll.u32 2131351028, %v196
  %v206 = vshrl.u32 2102212464, %v197
  %v207 = vor.u32 %v205, %v206
  %v208 = vshll.u32 2102212464, %v196
  %v209 = vshrl.u32 920167782, %v197
  %v210 = vor.u32 %v208, %v209
  %v211 = vshll.u32 920167782, %v196
  %v212 = vshrl.u32 1326507024, %v197
  %v213 = vor.u32 %v211, %v212
  %vm214 = vcmp.lt.s32.totalorder %v195, 1
  %vm215 = vcmp.lt.s32.totalorder %v195, 2
  %vm216 = vcmp.lt.s32.totalorder %v195, 3
  %vm217 = vcmp.lt.s32.totalorder %v195, 4
  %v218 = vsel %vm214, %v198, %v201
  %v219 = vsel %vm217, %v207, 2102212464
  %v220 = vsel %vm216, %v204, %v219
  %v221 = vsel %vm215, %v218, %v220
  %v222 = vsel %vm214, %v201, %v204
  %v223 = vsel %vm217, %v210, 920167782
  %v224 = vsel %vm216, %v207, %v223
  %v225 = vsel %vm215, %v222, %v224
  %v226 = vsel %vm214, %v204, %v207
  %v227 = vsel %vm217, %v213, 1326507024
  %v228 = vsel %vm216, %v210, %v227
  %v229 = vsel %vm215, %v226, %v228
  %v230 = vshll.u32 %v190, 8
  %v231 = vmul.u32.u64.compose %v230, %v229
  %v232 = vextract.low.u32 %v231
  %v233 = vextract.high.u32 %v231
  %v234 = vmul.u32.u64.compose %v230, %v225
  %v235 = vextract.low.u32 %v234
  %v236 = vextract.high.u32 %v234
  %v237 = vmul.u32 %v230, %v221
  %v238 = vadd.s32 %v233, %v235
  %vm239 = vc.u32 %v233, %v235
  %v240 = vadd.s32 %v236, 1
  %v241 = vsel %vm239, %v240, %v236
  %v242 = vadd.s32 %v237, %v241
  %v243 = vadd.s32 %v242, 536870912
  %v244 = vshrl.u32 %v243, 30
  %v245 = vshll.u32 %v244, 30
  %v246 = vsub.s32 %v242, %v245
  %vm247 = vcmp.lt.s32.totalorder %v246, 0
  %v248 = vsub.s32 0, %v246
  %v249 = vsel %vm247, %v248, %v246
  %v250 = vclz %v249
  %v251 = vsub.s32 %v250, 2
  %vm252 = vcmp.gt.s32.totalorder 0, %v251
  %v253 = vsel %vm252, 0, %v251
  %v254 = vsub.s32 32, %v253
  %v255 = vshll.u32 %v246, %v253
  %v256 = vshrl.u32 %v238, %v254
  %v257 = vor.u32 %v255, %v256
  %v258 = vsub.s32 4294967266, %v253
  %v259 = vadd.s32 %v258, 127
  %v260 = vshll.u32 %v259, 23
  %v261 = vor.u32 4788187, %v260
  %v262 = vand.u32 2147483647, %v261
  %v264 = vcvt.s32.f32 %v257
  %v265 = vmul.f32 %v264, %v262
  %v266 = vxor.u32 %v265, 2147483648
  %v267 = vsel %vm184, %v266, %v265
  %v268 = vsub.s32 4, %v244
  %v269 = vsel %vm184, %v268, %v244
  %v270 = vsel %vm183, %v77, %v267
  %v271 = vsel %vm183, 0, %v269
  %v272 = vcosq.f32.pop %v270
  %v273 = vsinq.f32.pop %v270
  %vm274 = vweird.f32 %v77
  %v275 = vadd.s32 %v271, 3
  %v276 = vand.u32 %v275, 3
  %vm277 = vcmp.lt.s32.totalorder %v276, 2
  %vm278 = vcmp.eq.s32.totalorder %v276, 0
  %v279 = vxor.u32 %v273, 2147483648
  %v280 = vsel %vm278, %v272, %v279
  %vm281 = vcmp.eq.s32.totalorder %v276, 2
  %v282 = vxor.u32 %v272, 2147483648
  %v283 = vsel %vm281, %v282, %v273
  %v284 = vsel %vm277, %v280, %v283
  %v285 = vsel %vm274, nan, %v284
  %vm286 = vcmask 130048
  %287 = vst.msk [vmem:[%s2] sm:$0xff] %vm286, %v181
  %288 = vst.msk [vmem:[%s2 + $0x8] sm:$0xff] %vm286, %v285
  %v289 = vand.u32 2147483647, %v76
  %vm290 = vcmp.le.f32.partialorder %v289, 0.7853982
  %vm291 = vcmp.lt.s32.totalorder %v76, 0
  %v292 = vand.u32 %v76, 2139095040
  %v293 = vshrl.u32 %v292, 23
  %v294 = vsub.s32 %v293, 127
  %v295 = vand.u32 2147483647, %v76
  %v296 = vand.u32 %v295, 8388607
  %v297 = vor.u32 %v296, 8388608
  %v298 = vsub.s32 0, %v297
  %v299 = vadd.s32 %v294, 1
  %vm300 = vcmp.gt.s32.totalorder %v299, 0
  %v301 = vsel %vm300, %v299, 0
  %v302 = vshrl.u32 %v301, 5
  %v303 = vand.u32 %v301, 31
  %v304 = vsub.s32 32, %v303
  %v305 = vshrl.u32 683565275, %v304
  %v306 = vshll.u32 683565275, %v303
  %v307 = vshrl.u32 2475754826, %v304
  %v308 = vor.u32 %v306, %v307
  %v309 = vshll.u32 2475754826, %v303
  %v310 = vshrl.u32 2131351028, %v304
  %v311 = vor.u32 %v309, %v310
  %v312 = vshll.u32 2131351028, %v303
  %v313 = vshrl.u32 2102212464, %v304
  %v314 = vor.u32 %v312, %v313
  %v315 = vshll.u32 2102212464, %v303
  %v316 = vshrl.u32 920167782, %v304
  %v317 = vor.u32 %v315, %v316
  %v318 = vshll.u32 920167782, %v303
  %v319 = vshrl.u32 1326507024, %v304
  %v320 = vor.u32 %v318, %v319
  %vm321 = vcmp.lt.s32.totalorder %v302, 1
  %vm322 = vcmp.lt.s32.totalorder %v302, 2
  %vm323 = vcmp.lt.s32.totalorder %v302, 3
  %vm324 = vcmp.lt.s32.totalorder %v302, 4
  %v325 = vsel %vm321, %v305, %v308
  %v326 = vsel %vm324, %v314, 2102212464
  %v327 = vsel %vm323, %v311, %v326
  %v328 = vsel %vm322, %v325, %v327
  %v329 = vsel %vm321, %v308, %v311
  %v330 = vsel %vm324, %v317, 920167782
  %v331 = vsel %vm323, %v314, %v330
  %v332 = vsel %vm322, %v329, %v331
  %v333 = vsel %vm321, %v311, %v314
  %v334 = vsel %vm324, %v320, 1326507024
  %v335 = vsel %vm323, %v317, %v334
  %v336 = vsel %vm322, %v333, %v335
  %v337 = vshll.u32 %v297, 8
  %v338 = vmul.u32.u64.compose %v337, %v336
  %v339 = vextract.low.u32 %v338
  %v340 = vextract.high.u32 %v338
  %v341 = vmul.u32.u64.compose %v337, %v332
  %v342 = vextract.low.u32 %v341
  %v343 = vextract.high.u32 %v341
  %v344 = vmul.u32 %v337, %v328
  %v345 = vadd.s32 %v340, %v342
  %vm346 = vc.u32 %v340, %v342
  %v347 = vadd.s32 %v343, 1
  %v348 = vsel %vm346, %v347, %v343
  %v349 = vadd.s32 %v344, %v348
  %v350 = vadd.s32 %v349, 536870912
  %v351 = vshrl.u32 %v350, 30
  %v352 = vshll.u32 %v351, 30
  %v353 = vsub.s32 %v349, %v352
  %vm354 = vcmp.lt.s32.totalorder %v353, 0
  %v355 = vsub.s32 0, %v353
  %v356 = vsel %vm354, %v355, %v353
  %v357 = vclz %v356
  %v358 = vsub.s32 %v357, 2
  %vm359 = vcmp.gt.s32.totalorder 0, %v358
  %v360 = vsel %vm359, 0, %v358
  %v361 = vsub.s32 32, %v360
  %v362 = vshll.u32 %v353, %v360
  %v363 = vshrl.u32 %v345, %v361
  %v364 = vor.u32 %v362, %v363
  %v365 = vsub.s32 4294967266, %v360
  %v366 = vadd.s32 %v365, 127
  %v367 = vshll.u32 %v366, 23
  %v368 = vor.u32 4788187, %v367
  %v369 = vand.u32 2147483647, %v368
  %v371 = vcvt.s32.f32 %v364
  %v372 = vmul.f32 %v371, %v369
  %v373 = vxor.u32 %v372, 2147483648
  %v374 = vsel %vm291, %v373, %v372
  %v375 = vsub.s32 4, %v351
  %v376 = vsel %vm291, %v375, %v351
  %v377 = vsel %vm290, %v76, %v374
  %v378 = vsel %vm290, 0, %v376
  %v379 = vcosq.f32.pop %v377
  %v380 = vsinq.f32.pop %v377
  %vm381 = vweird.f32 %v76
  %v382 = vand.u32 %v378, 3
  %vm383 = vcmp.lt.s32.totalorder %v382, 2
  %vm384 = vcmp.eq.s32.totalorder %v382, 0
  %v385 = vxor.u32 %v380, 2147483648
  %v386 = vsel %vm384, %v379, %v385
  %vm387 = vcmp.eq.s32.totalorder %v382, 2
  %v388 = vxor.u32 %v379, 2147483648
  %v389 = vsel %vm387, %v388, %v380
  %v390 = vsel %vm383, %v386, %v389
  %v391 = vsel %vm381, nan, %v390
  %v392 = vand.u32 2147483647, %v77
  %vm393 = vcmp.le.f32.partialorder %v392, 0.7853982
  %vm394 = vcmp.lt.s32.totalorder %v77, 0
  %v395 = vand.u32 %v77, 2139095040
  %v396 = vshrl.u32 %v395, 23
  %v397 = vsub.s32 %v396, 127
  %v398 = vand.u32 2147483647, %v77
  %v399 = vand.u32 %v398, 8388607
  %v400 = vor.u32 %v399, 8388608
  %v401 = vsub.s32 0, %v400
  %v402 = vadd.s32 %v397, 1
  %vm403 = vcmp.gt.s32.totalorder %v402, 0
  %v404 = vsel %vm403, %v402, 0
  %v405 = vshrl.u32 %v404, 5
  %v406 = vand.u32 %v404, 31
  %v407 = vsub.s32 32, %v406
  %v408 = vshrl.u32 683565275, %v407
  %v409 = vshll.u32 683565275, %v406
  %v410 = vshrl.u32 2475754826, %v407
  %v411 = vor.u32 %v409, %v410
  %v412 = vshll.u32 2475754826, %v406
  %v413 = vshrl.u32 2131351028, %v407
  %v414 = vor.u32 %v412, %v413
  %v415 = vshll.u32 2131351028, %v406
  %v416 = vshrl.u32 2102212464, %v407
  %v417 = vor.u32 %v415, %v416
  %v418 = vshll.u32 2102212464, %v406
  %v419 = vshrl.u32 920167782, %v407
  %v420 = vor.u32 %v418, %v419
  %v421 = vshll.u32 920167782, %v406
  %v422 = vshrl.u32 1326507024, %v407
  %v423 = vor.u32 %v421, %v422
  %vm424 = vcmp.lt.s32.totalorder %v405, 1
  %vm425 = vcmp.lt.s32.totalorder %v405, 2
  %vm426 = vcmp.lt.s32.totalorder %v405, 3
  %vm427 = vcmp.lt.s32.totalorder %v405, 4
  %v428 = vsel %vm424, %v408, %v411
  %v429 = vsel %vm427, %v417, 2102212464
  %v430 = vsel %vm426, %v414, %v429
  %v431 = vsel %vm425, %v428, %v430
  %v432 = vsel %vm424, %v411, %v414
  %v433 = vsel %vm427, %v420, 920167782
  %v434 = vsel %vm426, %v417, %v433
  %v435 = vsel %vm425, %v432, %v434
  %v436 = vsel %vm424, %v414, %v417
  %v437 = vsel %vm427, %v423, 1326507024
  %v438 = vsel %vm426, %v420, %v437
  %v439 = vsel %vm425, %v436, %v438
  %v440 = vshll.u32 %v400, 8
  %v441 = vmul.u32.u64.compose %v440, %v439
  %v442 = vextract.low.u32 %v441
  %v443 = vextract.high.u32 %v441
  %v444 = vmul.u32.u64.compose %v440, %v435
  %v445 = vextract.low.u32 %v444
  %v446 = vextract.high.u32 %v444
  %v447 = vmul.u32 %v440, %v431
  %v448 = vadd.s32 %v443, %v445
  %vm449 = vc.u32 %v443, %v445
  %v450 = vadd.s32 %v446, 1
  %v451 = vsel %vm449, %v450, %v446
  %v452 = vadd.s32 %v447, %v451
  %v453 = vadd.s32 %v452, 536870912
  %v454 = vshrl.u32 %v453, 30
  %v455 = vshll.u32 %v454, 30
  %v456 = vsub.s32 %v452, %v455
  %vm457 = vcmp.lt.s32.totalorder %v456, 0
  %v458 = vsub.s32 0, %v456
  %v459 = vsel %vm457, %v458, %v456
  %v460 = vclz %v459
  %v461 = vsub.s32 %v460, 2
  %vm462 = vcmp.gt.s32.totalorder 0, %v461
  %v463 = vsel %vm462, 0, %v461
  %v464 = vsub.s32 32, %v463
  %v465 = vshll.u32 %v456, %v463
  %v466 = vshrl.u32 %v448, %v464
  %v467 = vor.u32 %v465, %v466
  %v468 = vsub.s32 4294967266, %v463
  %v469 = vadd.s32 %v468, 127
  %v470 = vshll.u32 %v469, 23
  %v471 = vor.u32 4788187, %v470
  %v472 = vand.u32 2147483647, %v471
  %v474 = vcvt.s32.f32 %v467
  %v475 = vmul.f32 %v474, %v472
  %v476 = vxor.u32 %v475, 2147483648
  %v477 = vsel %vm394, %v476, %v475
  %v478 = vsub.s32 4, %v454
  %v479 = vsel %vm394, %v478, %v454
  %v480 = vsel %vm393, %v77, %v477
  %v481 = vsel %vm393, 0, %v479
  %v482 = vcosq.f32.pop %v480
  %v483 = vsinq.f32.pop %v480
  %vm484 = vweird.f32 %v77
  %v485 = vand.u32 %v481, 3
  %vm486 = vcmp.lt.s32.totalorder %v485, 2
  %vm487 = vcmp.eq.s32.totalorder %v485, 0
  %v488 = vxor.u32 %v483, 2147483648
  %v489 = vsel %vm487, %v482, %v488
  %vm490 = vcmp.eq.s32.totalorder %v485, 2
  %v491 = vxor.u32 %v482, 2147483648
  %v492 = vsel %vm490, %v491, %v483
  %v493 = vsel %vm486, %v489, %v492
  %v494 = vsel %vm484, nan, %v493
  %495 = vst.msk [vmem:[%s2 + $0x10] sm:$0xff] %vm286, %v391
  %496 = vst.msk [vmem:[%s2 + $0x18] sm:$0xff] %vm286, %v494
  // Predicated region
  $region10: #{tpu_custom_call.1} parent=0 // pred_check
    _
  $region11: #{tpu_custom_call.1} parent=0 // pred_check_branch
    %498 = sbr.rel (0) target = $region13
  $region12: #{tpu_custom_call.1} parent=0 // pred_region
    _
  $region13: #{tpu_custom_call.1} parent=0 // pred_fallthru
    _
  // Predicated region
  $region14: #{tpu_custom_call.1} parent=0 // pred_check
    _
  $region15: #{tpu_custom_call.1} parent=0 // pred_check_branch
    %500 = sbr.rel (0) target = $region17
  $region16: #{tpu_custom_call.1} parent=0 // pred_region
    _
  $region17: #{tpu_custom_call.1} parent=0 // pred_fallthru
    _

</llo_original>
